<compile_context>
chip_gen: v7x
topology: tpu7x:2x2x1
jax: 0.10.0
libtpu: 0.0.40
codegen_flags: <defaults>
</compile_context>

<pallas_src>
import jax
import jax.numpy as jnp
from jax.experimental import pallas as pl
from jax.experimental.pallas import tpu as pltpu


_MAX_LANES = 4096        # widest lane-dense slab we will try
_FALLBACK_LANES = 1024   # lane width used when padding is required


def _vmem_budget():
    """Generation-aware (target_tile_bytes, vmem_limit_bytes)."""
    try:
        cap = pltpu.get_tpu_info().vmem_capacity_bytes
    except Exception:  # pragma: no cover - trace-time query unavailable
        cap = 64 << 20  # conservative: assume the smallest (v7x-sized) VMEM
    # Leave >=16 MiB headroom for compiler scratch; never ask for more than
    # 64 MiB of scoped VMEM.
    limit = max(16 << 20, min(cap - (16 << 20), 64 << 20))
    # Double-buffered footprint = 2 bufs x (in_tile + out_tile) = 4x tile;
    # keep slack so tiles land at ~8-10 MiB (32-40 MiB footprint).
    target_tile = min(10 << 20, limit // 5)
    return int(target_tile), int(limit)


def _native_bf16_ok():
    """True on chips with bf16 VPU/EUP paths (v6e, v7x)."""
    try:
        kind = jax.devices()[0].device_kind.lower()
    except Exception:  # pragma: no cover
        return False
    return ("v6" in kind) or ("v7" in kind)


def _pick_lane_width(total):
    """Largest 128*k (k*128 <= _MAX_LANES) dividing the flat element count."""
    max_k = min(total // 128, _MAX_LANES // 128)
    for k in range(max_k, 0, -1):
        lanes = 128 * k
        if total % lanes == 0:
            return lanes
    return None


def _pick_block_rows(rows, lanes, itemsize, target_tile_bytes):
    """Row-block size: ~target-sized tiles, dtype-aware sublane multiple,
    >=2 grid steps when possible, roughly uniform block sizes."""
    sublane = 8 * max(1, 4 // itemsize)  # 8 f32 / 16 bf16 / 32 int8,fp8
    if rows <= sublane:
        return rows
    ideal = max(sublane, target_tile_bytes // (lanes * itemsize))
    ideal = min(ideal, rows)
    # At least 2 grid steps so v7x's two TensorCores both issue DMAs.
    nsteps = max(2, pl.cdiv(rows, ideal))
    br = pl.cdiv(rows, nsteps)
    # Round to the sublane packing multiple (avoids half-populated packed
    # vregs / repacking on tile edges for sub-32-bit dtypes).
    br = max(sublane, ((br + sublane - 1) // sublane) * sublane)
    return min(br, rows)


def make_lambda(f):
    """Build a Pallas-backed Lambda(f) forward for elementwise f."""

    def forward(x):
        orig_shape = x.shape
        total = x.size
        itemsize = jnp.dtype(x.dtype).itemsize
        target_tile, vmem_limit = _vmem_budget()

        lanes = _pick_lane_width(total)
        padded_total = total
        if lanes is None:
            # Rank-agnostic fallback: pad the flat array up to a lane-dense
            # width so output stores stay unmasked, slice the tail after.
            lanes = _FALLBACK_LANES
            padded_total = pl.cdiv(total, lanes) * lanes

        flat = x.reshape(-1)
        if padded_total != total:
            flat = jnp.pad(flat, (0, padded_total - total))
        rows = padded_total // lanes
        x2d = flat.reshape(rows, lanes)

        block_rows = _pick_block_rows(rows, lanes, itemsize, target_tile)
        grid = (pl.cdiv(rows, block_rows),)

        # Compute dtype: native bf16 on v6e/v7x, otherwise f32 (v5e has no
        # bf16 VPU/EUP path; f32 inputs stay f32 — no cast either way).
        if x.dtype == jnp.bfloat16 and _native_bf16_ok():
            compute_dtype = jnp.bfloat16
        else:
            compute_dtype = jnp.float32

        def _kernel(x_ref, o_ref):
            xv = x_ref[...]
            if xv.dtype != compute_dtype:
                xv = xv.astype(compute_dtype)
            o_ref[...] = f(xv).astype(o_ref.dtype)

        out2d = pl.pallas_call(
            _kernel,
            out_shape=jax.ShapeDtypeStruct((rows, lanes), x.dtype),
            grid=grid,
            in_specs=[pl.BlockSpec((block_rows, lanes), lambda i: (i, 0))],
            out_specs=pl.BlockSpec((block_rows, lanes), lambda i: (i, 0)),
            compiler_params=pltpu.CompilerParams(
                dimension_semantics=("parallel",),
                vmem_limit_bytes=vmem_limit,
            ),
        )(x2d)

        out = out2d.reshape(-1)
        if padded_total != total:
            out = out[:total]
        return out.reshape(orig_shape)

    return forward


# Lambda(torch.tanh) equivalent.
lambda_forward = make_lambda(jnp.tanh)


if __name__ == "__main__":
    key = jax.random.PRNGKey(0)
    x = jax.random.normal(key, (2, 4, 16, 16), dtype=jnp.float32)

    y = lambda_forward(x)
    jax.block_until_ready(y)

    # Correctness check against the pure-JAX reference of f(x) = tanh(x).
    y_ref = jnp.tanh(x)
    assert y.shape == x.shape and y.dtype == x.dtype
    assert jnp.allclose(y, y_ref, atol=1e-5, rtol=1e-5)

    print("KERNEL_OK")
</pallas_src>

<mosaic_0001>
module attributes {stable_mosaic.version = 11 : i64} {
  func.func @_kernel(%arg0: i32, %arg1: memref<1x2048xf32, #tpu.memory_space<vmem>>, %arg2: memref<1x2048xf32, #tpu.memory_space<vmem>>) attributes {dimension_semantics = [#tpu.dimension_semantics<parallel>], iteration_bounds = array<i64: 1>, scalar_prefetch = 0 : i64, scratch_operands = 0 : i64, tpu.core_type = #tpu.core_type<tc>, window_params = [{transform_indices = @transform_0, window_bounds = array<i64: 1, 2048>}, {transform_indices = @transform_1, window_bounds = array<i64: 1, 2048>}]} {
    %c0 = arith.constant 0 : index
    %c0_0 = arith.constant 0 : index
    %0 = vector.load %arg1[%c0, %c0_0] : memref<1x2048xf32, #tpu.memory_space<vmem>>, vector<1x2048xf32>
    %1 = math.tanh %0 : vector<1x2048xf32>
    %c0_1 = arith.constant 0 : index
    %c0_2 = arith.constant 0 : index
    %2 = vector.load %arg2[%c0_1, %c0_2] : memref<1x2048xf32, #tpu.memory_space<vmem>>, vector<1x2048xf32>
    tpu.vector_store %arg2[%c0_1, %c0_2], %1 {strides = array<i32>} : memref<1x2048xf32, #tpu.memory_space<vmem>>, vector<1x2048xf32>,
    return
  }
  func.func @transform_0(%arg0: i32) -> (i32, i32) {
    %c0_i32 = arith.constant 0 : i32
    %c0_i32_0 = arith.constant 0 : i32
    return %arg0, %c0_i32 : i32, i32
  }
  func.func @transform_1(%arg0: i32) -> (i32, i32) {
    %c0_i32 = arith.constant 0 : i32
    %c0_i32_0 = arith.constant 0 : i32
    return %arg0, %c0_i32 : i32, i32
  }
}

</mosaic_0001>

<llo_original>
// kernel: tpu_custom_call.1
$region0: #{tpu_custom_call.1}
  #allocation0 [shape = 'u32[]', space=smem, size = 0x4, offset = 0x4, fixed_abs, tag = 'smem constant byte address 0x4 - core index']
  #allocation1 [shape = 'u32[144,128]{1,0:T(1,128)}', space=vmem, size = 0x12000, scoped, tag = 'internal scratch']
  %s0 = inlined_call_operand.hbm [shape: f32[1,2048], index: 0, kind: input, shape index: {}]
  %s1 = inlined_call_operand.hbm [shape: f32[1,2048], index: 1, kind: output, shape index: {}]
  %s2 = sld [smem:[#allocation0]]
  $region18: #{tpu_custom_call.1} parent=0
    _
  %s4 = ssub.s32 1, %s2
  %s5 = scalar_select 0, %s4, %s2
  $region1: #{tpu_custom_call.1} parent=0
    #allocation2 [shape = 'u8[8192]{0}', space=vmem, size = 0x2000, scoped, tag = 'input window, operand 0, single buffered']
    #allocation3 [shape = 's32[1]{0}', space=sflag, size = 0x4, scoped, tag = 'scoped memory for tpu_custom_call.1']
    #allocation4 [shape = 's32[1]{0}', space=sflag, size = 0x4, scoped, tag = 'scoped memory for tpu_custom_call.1']
    #allocation5 [shape = 'u8[8192]{0}', space=vmem, size = 0x2000, scoped, tag = 'output window, operand 0, single buffered']
    %6 = vsyncpa [#allocation3], 0
    %7 = vsyncpa [#allocation4], 0
    // Predicated region
    $region2: #{tpu_custom_call.1} parent=1 // pred_check
      _
    $region3: #{tpu_custom_call.1} parent=1 // pred_check_branch
      %9 = sbr.rel (0) target = $region5
    $region4: #{tpu_custom_call.1} parent=1 // pred_region
      %s11 = ssub.s32 256, 256
      %12 = vsyncadd [#allocation3], %s11
      %s14 = sshll.u32 [#allocation2], 4
      %s15 = int_to_ptr.vmem [resolvable:$true] %s14
      %17 = dma.hbm_to_vmem [thread:$0]  %s0, 256, %s15, [#allocation3]
    $region5: #{tpu_custom_call.1} parent=1 // pred_fallthru
      _
    // Predicated region
    $region6: #{tpu_custom_call.1} parent=1 // pred_check
      _
    $region7: #{tpu_custom_call.1} parent=1 // pred_check_branch
      %19 = sbr.rel (0) target = $region9
    $region8: #{tpu_custom_call.1} parent=1 // pred_region
      %20 = dma.done [#allocation3], 256
    $region9: #{tpu_custom_call.1} parent=1 // pred_fallthru
      _
    %v21 = vld [vmem:[#allocation2] sm:$0xff]
    %v22 = vld [vmem:[#allocation2 + $0x8] sm:$0xff]
    %v23 = vtanh.pop %v21
    %v24 = vtanh.pop %v22
    %25 = vst [vmem:[#allocation5] sm:$0xff] %v23
    %26 = vst [vmem:[#allocation5 + $0x8] sm:$0xff] %v24
    // Predicated region
    $region10: #{tpu_custom_call.1} parent=1 // pred_check
      _
    $region11: #{tpu_custom_call.1} parent=1 // pred_check_branch
      %28 = sbr.rel (0) target = $region13
    $region12: #{tpu_custom_call.1} parent=1 // pred_region
      %s30 = ssub.s32 256, 256
      %31 = vsyncadd [#allocation4], %s30
      %s33 = sshll.u32 [#allocation5], 4
      %s34 = int_to_ptr.vmem [resolvable:$true] %s33
      %36 = dma.vmem_to_hbm [thread:$0]  %s34, 256, %s1, [#allocation4]
    $region13: #{tpu_custom_call.1} parent=1 // pred_fallthru
      _
    // Predicated region
    $region14: #{tpu_custom_call.1} parent=1 // pred_check
      _
    $region15: #{tpu_custom_call.1} parent=1 // pred_check_branch
      %38 = sbr.rel (0) target = $region17
    $region16: #{tpu_custom_call.1} parent=1 // pred_region
      %39 = dma.done [#allocation4], 256
    $region17: #{tpu_custom_call.1} parent=1 // pred_fallthru
      _
    %40 = vsyncpa [#allocation3], 1
    %41 = vsyncpa [#allocation4], 1

</llo_original>
